<compile_context>
chip_gen: v7x
topology: tpu7x:2x2x1
jax: 0.10.0
libtpu: 0.0.40
codegen_flags: <defaults>
</compile_context>

<pallas_src>
import functools

import jax
import jax.numpy as jnp
from jax.experimental import pallas as pl
from jax.experimental.pallas import tpu as pltpu


def _round_up(x, m):
    return ((x + m - 1) // m) * m


# ---------------------------------------------------------------------------
# Fused kernel: whole multi-layer, multi-expert MLP in one grid step per batch
# tile.  refs = (x_ref, w_0, b_0, w_1, b_1, ..., o_ref)
# ---------------------------------------------------------------------------
def _fused_parallel_mlp_kernel(*refs, n_layers, apply_final_act):
    x_ref = refs[0]
    o_ref = refs[-1]

    h = x_ref[...]                                   # (TB, C0)  bf16
    for i in range(n_layers):
        w = refs[1 + 2 * i][...]                     # (R_i, Np_i)  bf16
        b = refs[2 + 2 * i][...]                     # (1, Np_i)    f32
        # MXU matmul with f32 accumulation; bias + ReLU stay in f32.
        acc = jnp.dot(h, w, preferred_element_type=jnp.float32) + b
        if i < n_layers - 1 or apply_final_act:
            acc = jnp.maximum(acc, 0.0)
        if i < n_layers - 1:
            h = acc.astype(w.dtype)                  # bf16 for next MXU matmul
        else:
            h = acc
    o_ref[...] = h.astype(o_ref.dtype)


def fused_parallel_mlp(x, weights, biases, apply_final_act, *, batch_tile=256):
    """x: (B, C0) bf16; weights[i]: (R_i, Np_i) bf16; biases[i]: (1, Np_i) f32.

    Returns (B, Np_last) float32 (lane-padded concatenated expert outputs).
    """
    B, C0 = x.shape
    n_layers = len(weights)
    np_last = weights[-1].shape[1]

    # Batch tiling: single block for small batches, 256-row tiles otherwise.
    if B <= batch_tile:
        tb = _round_up(B, 8)
        b_pad = tb
    else:
        tb = batch_tile
        b_pad = _round_up(B, tb)
    if b_pad != B:
        x = jnp.pad(x, ((0, b_pad - B), (0, 0)))

    grid = (b_pad // tb,)

    in_specs = [pl.BlockSpec((tb, C0), lambda b: (b, 0))]
    args = [x]
    for w, bia in zip(weights, biases):
        # Weights/bias: whole-array blocks, same block index for every grid
        # step -> stay VMEM-resident across the batch loop (no re-DMA).
        in_specs.append(pl.BlockSpec(w.shape, lambda b: (0, 0)))
        in_specs.append(pl.BlockSpec(bia.shape, lambda b: (0, 0)))
        args.append(w)
        args.append(bia)

    kernel = functools.partial(
        _fused_parallel_mlp_kernel,
        n_layers=n_layers,
        apply_final_act=apply_final_act,
    )

    out = pl.pallas_call(
        kernel,
        out_shape=jax.ShapeDtypeStruct((b_pad, np_last), jnp.float32),
        grid_spec=pltpu.PrefetchScalarGridSpec(
            num_scalar_prefetch=0,
            grid=grid,
            in_specs=in_specs,
            out_specs=pl.BlockSpec((tb, np_last), lambda b: (b, 0)),
        ),
        compiler_params=pltpu.CompilerParams(
            dimension_semantics=("parallel",)),
    )(*args)

    return out[:B] if b_pad != B else out


class ParallelDNNLayerPallas:
    """JAX/Pallas port of gbiz_torch ParallelDNNLayer (use_bn=False, dropout=0)."""

    def __init__(self, in_shape, hidden_units, n_experts=2,
                 apply_final_act=True, seed=1024,
                 compute_dtype=jnp.bfloat16):
        self.in_shape = int(in_shape)
        self.hidden_units = list(hidden_units)
        self.n_experts = int(n_experts)
        self.apply_final_act = apply_final_act
        self.compute_dtype = compute_dtype

        dims = [self.in_shape] + self.hidden_units
        key = jax.random.PRNGKey(seed)

        # Raw parameters in the torch layout (for reference parity):
        #   kernels[i]: (c, d, e)   bias[i]: (e, d)
        self.kernels = []
        self.bias = []
        for i in range(len(self.hidden_units)):
            key, sub = jax.random.split(key)
            c, d, e = dims[i], dims[i + 1], self.n_experts
            # xavier_normal_ on a (c, d, e) tensor:
            #   fan_in = size(1)*size(2) = d*e, fan_out = size(0)*size(2) = c*e
            fan_in, fan_out = d * e, c * e
            std = (2.0 / (fan_in + fan_out)) ** 0.5
            self.kernels.append(
                std * jax.random.normal(sub, (c, d, e), dtype=jnp.float32))
            self.bias.append(jnp.zeros((e, d), dtype=jnp.float32))

        # TODO(synk): use_bn (BatchNorm1d) and dropout paths not implemented
        # (module defaults: use_bn=False, dropout_rate=0).

        self._build_fused_params()

    def _build_fused_params(self):
        """Pre-transpose / concatenate / zero-pad weights ONCE (static)."""
        dims = [self.in_shape] + self.hidden_units
        E = self.n_experts
        self.fused_w = []   # bf16, lane-padded
        self.fused_b = []   # f32,  lane-padded, shape (1, Np)
        for i in range(len(self.hidden_units)):
            d_in, d_out = dims[i], dims[i + 1]
            np_out = _round_up(E * d_out, 128)
            w = self.kernels[i]                                  # (d_in, d_out, E)
            if i == 0:
                # Shared input: concatenate experts along the lane dim.
                w_cat = jnp.transpose(w, (0, 2, 1)).reshape(d_in, E * d_out)
                w_full = jnp.zeros((d_in, np_out), jnp.float32)
                w_full = w_full.at[:, :E * d_out].set(w_cat)
            else:
                # Per-expert block-diagonal so the whole layer is one matmul.
                np_in = _round_up(E * d_in, 128)
                w_full = jnp.zeros((np_in, np_out), jnp.float32)
                for e in range(E):
                    w_full = w_full.at[
                        e * d_in:(e + 1) * d_in,
                        e * d_out:(e + 1) * d_out].set(w[:, :, e])
            b_full = jnp.zeros((1, np_out), jnp.float32)
            b_full = b_full.at[0, :E * d_out].set(self.bias[i].reshape(-1))
            self.fused_w.append(w_full.astype(self.compute_dtype))
            self.fused_b.append(b_full)

    def __call__(self, x):
        # x: (B, in_dim) -> (B, n_experts, hidden_units[-1])
        B = x.shape[0]
        E = self.n_experts
        d_last = self.hidden_units[-1]
        x_c = x.astype(self.compute_dtype)
        out = fused_parallel_mlp(x_c, self.fused_w, self.fused_b,
                                 self.apply_final_act)
        return out[:, :E * d_last].reshape(B, E, d_last)


def reference_forward(layer, x):
    """Pure-JAX f32 reference matching the torch einsum semantics."""
    deep = jnp.broadcast_to(x[:, None, :],
                            (x.shape[0], layer.n_experts, x.shape[-1]))
    deep = deep.astype(jnp.float32)
    n_layers = len(layer.hidden_units)
    for i in range(n_layers):
        fc = jnp.einsum('aec,cde->aed', deep, layer.kernels[i])
        fc = fc + layer.bias[i][None, :, :]
        if (i < n_layers - 1) or layer.apply_final_act:
            fc = jnp.maximum(fc, 0.0)
        deep = fc
    return deep


if __name__ == "__main__":
    batch = 8
    in_dim = 32
    hidden_units = [64, 32]
    n_experts = 2

    key = jax.random.PRNGKey(0)
    x = jax.random.normal(key, (batch, in_dim), dtype=jnp.float32)

    layer = ParallelDNNLayerPallas(in_dim, hidden_units,
                                   n_experts=n_experts,
                                   apply_final_act=True, seed=1024)

    out = layer(x)
    out = jax.block_until_ready(out)

    ref = reference_forward(layer, x)
    assert out.shape == (batch, n_experts, hidden_units[-1]), out.shape
    # bf16 matmul inputs (f32 accumulation) -> relaxed tolerance vs f32 ref.
    max_err = float(jnp.max(jnp.abs(out - ref)))
    assert jnp.allclose(out, ref, atol=2e-2, rtol=2e-2), max_err

    print("KERNEL_OK")
</pallas_src>

<mosaic_0001>
module attributes {stable_mosaic.version = 11 : i64} {
  func.func @_fused_parallel_mlp_kernel(%arg0: i32, %arg1: memref<8x32xbf16, #tpu.memory_space<vmem>>, %arg2: memref<32x128xbf16, #tpu.memory_space<vmem>>, %arg3: memref<1x128xf32, #tpu.memory_space<vmem>>, %arg4: memref<128x128xbf16, #tpu.memory_space<vmem>>, %arg5: memref<1x128xf32, #tpu.memory_space<vmem>>, %arg6: memref<8x128xf32, #tpu.memory_space<vmem>>) attributes {dimension_semantics = [#tpu.dimension_semantics<parallel>], iteration_bounds = array<i64: 1>, scalar_prefetch = 0 : i64, scratch_operands = 0 : i64, tpu.core_type = #tpu.core_type<tc>, window_params = [{transform_indices = @transform_0, window_bounds = array<i64: 8, 32>}, {pipeline_mode = #tpu.pipeline_mode<synchronous>, transform_indices = @transform_1, window_bounds = array<i64: 32, 128>}, {pipeline_mode = #tpu.pipeline_mode<synchronous>, transform_indices = @transform_2, window_bounds = array<i64: 1, 128>}, {pipeline_mode = #tpu.pipeline_mode<synchronous>, transform_indices = @transform_3, window_bounds = array<i64: 128, 128>}, {pipeline_mode = #tpu.pipeline_mode<synchronous>, transform_indices = @transform_4, window_bounds = array<i64: 1, 128>}, {transform_indices = @transform_5, window_bounds = array<i64: 8, 128>}]} {
    %c0 = arith.constant 0 : index
    %c0_0 = arith.constant 0 : index
    %0 = vector.load %arg1[%c0, %c0_0] : memref<8x32xbf16, #tpu.memory_space<vmem>>, vector<8x32xbf16>
    %c0_1 = arith.constant 0 : index
    %c0_2 = arith.constant 0 : index
    %1 = vector.load %arg2[%c0_1, %c0_2] : memref<32x128xbf16, #tpu.memory_space<vmem>>, vector<32x128xbf16>
    %c0_3 = arith.constant 0 : index
    %c0_4 = arith.constant 0 : index
    %2 = vector.load %arg3[%c0_3, %c0_4] : memref<1x128xf32, #tpu.memory_space<vmem>>, vector<1x128xf32>
    %cst = arith.constant dense<0.000000e+00> : vector<8x128xf32>
    %3 = tpu.matmul %0, %1, %cst {dimension_numbers = #tpu.dot_dimension_numbers<[1], [0], [0], [1], [0, 0, 1, 1], [], []>} : vector<8x32xbf16>, vector<32x128xbf16>, vector<8x128xf32> -> vector<8x128xf32>
    %4 = vector.broadcast %2 : vector<1x128xf32> to vector<8x128xf32>
    %5 = arith.addf %3, %4 : vector<8x128xf32>
    %cst_5 = arith.constant 0.000000e+00 : f32
    %6 = vector.broadcast %cst_5 : f32 to vector<8x128xf32>
    %7 = arith.maximumf %5, %6 : vector<8x128xf32>
    %8 = arith.truncf %7 : vector<8x128xf32> to vector<8x128xbf16>
    %c0_6 = arith.constant 0 : index
    %c0_7 = arith.constant 0 : index
    %9 = vector.load %arg4[%c0_6, %c0_7] : memref<128x128xbf16, #tpu.memory_space<vmem>>, vector<128x128xbf16>
    %c0_8 = arith.constant 0 : index
    %c0_9 = arith.constant 0 : index
    %10 = vector.load %arg5[%c0_8, %c0_9] : memref<1x128xf32, #tpu.memory_space<vmem>>, vector<1x128xf32>
    %cst_10 = arith.constant dense<0.000000e+00> : vector<8x128xf32>
    %11 = tpu.matmul %8, %9, %cst_10 {dimension_numbers = #tpu.dot_dimension_numbers<[1], [0], [0], [1], [0, 0, 1, 1], [], []>} : vector<8x128xbf16>, vector<128x128xbf16>, vector<8x128xf32> -> vector<8x128xf32>
    %12 = vector.broadcast %10 : vector<1x128xf32> to vector<8x128xf32>
    %13 = arith.addf %11, %12 : vector<8x128xf32>
    %cst_11 = arith.constant 0.000000e+00 : f32
    %14 = vector.broadcast %cst_11 : f32 to vector<8x128xf32>
    %15 = arith.maximumf %13, %14 : vector<8x128xf32>
    %c0_12 = arith.constant 0 : index
    %c0_13 = arith.constant 0 : index
    %16 = vector.load %arg6[%c0_12, %c0_13] : memref<8x128xf32, #tpu.memory_space<vmem>>, vector<8x128xf32>
    tpu.vector_store %arg6[%c0_12, %c0_13], %15 {strides = array<i32>} : memref<8x128xf32, #tpu.memory_space<vmem>>, vector<8x128xf32>,
    return
  }
  func.func @transform_0(%arg0: i32) -> (i32, i32) {
    %c0_i32 = arith.constant 0 : i32
    %c0_i32_0 = arith.constant 0 : i32
    return %arg0, %c0_i32 : i32, i32
  }
  func.func @transform_1(%arg0: i32) -> (i32, i32) {
    %c0_i32 = arith.constant 0 : i32
    %c0_i32_0 = arith.constant 0 : i32
    %c0_i32_1 = arith.constant 0 : i32
    return %c0_i32, %c0_i32_0 : i32, i32
  }
  func.func @transform_2(%arg0: i32) -> (i32, i32) {
    %c0_i32 = arith.constant 0 : i32
    %c0_i32_0 = arith.constant 0 : i32
    %c0_i32_1 = arith.constant 0 : i32
    return %c0_i32, %c0_i32_0 : i32, i32
  }
  func.func @transform_3(%arg0: i32) -> (i32, i32) {
    %c0_i32 = arith.constant 0 : i32
    %c0_i32_0 = arith.constant 0 : i32
    %c0_i32_1 = arith.constant 0 : i32
    return %c0_i32, %c0_i32_0 : i32, i32
  }
  func.func @transform_4(%arg0: i32) -> (i32, i32) {
    %c0_i32 = arith.constant 0 : i32
    %c0_i32_0 = arith.constant 0 : i32
    %c0_i32_1 = arith.constant 0 : i32
    return %c0_i32, %c0_i32_0 : i32, i32
  }
  func.func @transform_5(%arg0: i32) -> (i32, i32) {
    %c0_i32 = arith.constant 0 : i32
    %c0_i32_0 = arith.constant 0 : i32
    return %arg0, %c0_i32 : i32, i32
  }
}

</mosaic_0001>

<llo_original>
// kernel: tpu_custom_call.1
$region0: #{tpu_custom_call.1}
  #allocation0 [shape = 'u32[]', space=smem, size = 0x4, offset = 0x4, fixed_abs, tag = 'smem constant byte address 0x4 - core index']
  #allocation1 [shape = 'u32[144,128]{1,0:T(1,128)}', space=vmem, size = 0x12000, scoped, tag = 'internal scratch']
  %s0 = inlined_call_operand.hbm [shape: bf16[8,32], index: 0, kind: input, shape index: {}]
  %s1 = inlined_call_operand.hbm [shape: bf16[32,128], index: 1, kind: input, shape index: {}]
  %s2 = inlined_call_operand.vmem [shape: f32[1,128], index: 2, kind: input, shape index: {}]
  %s3 = inlined_call_operand.hbm [shape: bf16[128,128], index: 3, kind: input, shape index: {}]
  %s4 = inlined_call_operand.vmem [shape: f32[1,128], index: 4, kind: input, shape index: {}]
  %s5 = inlined_call_operand.hbm [shape: f32[8,128], index: 5, kind: output, shape index: {}]
  %s6 = sld [smem:[#allocation0]]
  $region42: #{tpu_custom_call.1} parent=0
    _
  %s8 = ssub.s32 1, %s6
  %s9 = scalar_select 0, %s8, %s6
  $region1: #{tpu_custom_call.1} parent=0
    #allocation2 [shape = 'u8[2048]{0}', space=vmem, size = 0x800, scoped, tag = 'input window, operand 0, single buffered']
    #allocation3 [shape = 's32[1]{0}', space=sflag, size = 0x4, scoped, tag = 'scoped memory for tpu_custom_call.1']
    #allocation4 [shape = 's32[1]{0}', space=sflag, size = 0x4, scoped, tag = 'scoped memory for tpu_custom_call.1']
    #allocation5 [shape = 'u8[8192]{0}', space=vmem, size = 0x2000, scoped, tag = 'input window, operand 1, single buffered']
    #allocation6 [shape = 's32[1]{0}', space=sflag, size = 0x4, scoped, tag = 'scoped memory for tpu_custom_call.1']
    #allocation7 [shape = 'u8[32768]{0}', space=vmem, size = 0x8000, scoped, tag = 'input window, operand 3, single buffered']
    #allocation8 [shape = 'u8[4096]{0}', space=vmem, size = 0x1000, scoped, tag = 'output window, operand 0, single buffered']
    %10 = vsyncpa [#allocation3], 0
    %11 = vsyncpa [#allocation6], 0
    %12 = vsyncpa [#allocation4], 0
    // Predicated region
    $region2: #{tpu_custom_call.1} parent=1 // pred_check
      _
    $region3: #{tpu_custom_call.1} parent=1 // pred_check_branch
      %14 = sbr.rel (0) target = $region5
    $region4: #{tpu_custom_call.1} parent=1 // pred_region
      %s16 = ssub.s32 64, 64
      %17 = vsyncadd [#allocation3], %s16
      %s19 = sshll.u32 [#allocation2], 4
      %s20 = int_to_ptr.vmem [resolvable:$true] %s19
      %22 = dma.hbm_to_vmem [thread:$0]  %s0, 64, %s20, [#allocation3]
    $region5: #{tpu_custom_call.1} parent=1 // pred_fallthru
      _
    // Predicated region
    $region6: #{tpu_custom_call.1} parent=1 // pred_check
      _
    $region7: #{tpu_custom_call.1} parent=1 // pred_check_branch
      %24 = sbr.rel (0) target = $region9
    $region8: #{tpu_custom_call.1} parent=1 // pred_region
      %s26 = ssub.s32 256, 256
      %27 = vsyncadd [#allocation6], %s26
      %s28 = sshll.u32 [#allocation5], 4
      %s29 = int_to_ptr.vmem [resolvable:$true] %s28
      %34 = dma.hbm_to_vmem [thread:$0]  %s1, 256, %s29, [#allocation6], 64, 64, 4
    $region9: #{tpu_custom_call.1} parent=1 // pred_fallthru
      _
    // Predicated region
    $region10: #{tpu_custom_call.1} parent=1 // pred_check
      _
    $region11: #{tpu_custom_call.1} parent=1 // pred_check_branch
      %36 = sbr.rel (0) target = $region13
    $region12: #{tpu_custom_call.1} parent=1 // pred_region
      _
    $region13: #{tpu_custom_call.1} parent=1 // pred_fallthru
      _
    // Predicated region
    $region14: #{tpu_custom_call.1} parent=1 // pred_check
      _
    $region15: #{tpu_custom_call.1} parent=1 // pred_check_branch
      %38 = sbr.rel (0) target = $region17
    $region16: #{tpu_custom_call.1} parent=1 // pred_region
      %s40 = ssub.s32 1024, 1024
      %41 = vsyncadd [#allocation6], %s40
      %s42 = sshll.u32 [#allocation7], 4
      %s43 = int_to_ptr.vmem [resolvable:$true] %s42
      %48 = dma.hbm_to_vmem [thread:$0]  %s3, 1024, %s43, [#allocation6], 64, 64, 4
    $region17: #{tpu_custom_call.1} parent=1 // pred_fallthru
      _
    // Predicated region
    $region18: #{tpu_custom_call.1} parent=1 // pred_check
      _
    $region19: #{tpu_custom_call.1} parent=1 // pred_check_branch
      %50 = sbr.rel (0) target = $region21
    $region20: #{tpu_custom_call.1} parent=1 // pred_region
      _
    $region21: #{tpu_custom_call.1} parent=1 // pred_fallthru
      _
    // Predicated region
    $region22: #{tpu_custom_call.1} parent=1 // pred_check
      _
    $region23: #{tpu_custom_call.1} parent=1 // pred_check_branch
      %52 = sbr.rel (0) target = $region25
    $region24: #{tpu_custom_call.1} parent=1 // pred_region
      %53 = dma.done [#allocation3], 64
    $region25: #{tpu_custom_call.1} parent=1 // pred_fallthru
      _
    // Predicated region
    $region26: #{tpu_custom_call.1} parent=1 // pred_check
      _
    $region27: #{tpu_custom_call.1} parent=1 // pred_check_branch
      %55 = sbr.rel (0) target = $region29
    $region28: #{tpu_custom_call.1} parent=1 // pred_region
      %56 = dma.done [#allocation6], 256
    $region29: #{tpu_custom_call.1} parent=1 // pred_fallthru
      _
    // Predicated region
    $region30: #{tpu_custom_call.1} parent=1 // pred_check
      _
    $region31: #{tpu_custom_call.1} parent=1 // pred_check_branch
      %58 = sbr.rel (0) target = $region33
    $region32: #{tpu_custom_call.1} parent=1 // pred_region
      %59 = dma.done [#allocation6], 1024
    $region33: #{tpu_custom_call.1} parent=1 // pred_fallthru
      _
    %v61 = vld [vmem:[#allocation2] sm:$0xf]
    %v62 = vld [vmem:[#allocation5] sm:$0xf]
    %v63 = vld [vmem:[#allocation5 + $0x4] sm:$0xf]
    %v64 = vld [vmem:[#allocation5 + $0x8] sm:$0xf]
    %v65 = vld [vmem:[#allocation5 + $0xc] sm:$0xf]
    %v66 = vld [vmem:[%s2] sm:$0x1]
    %v68 = vlaneseq
    %v69 = vshrl.u32 %v68, 7
    %v70 = vsub.s32 0, %v69
    %v71 = vrot.slane %v66, %v70
    %v77 = vunpack.c.l.b16 %v62
    %v78 = vunpack.c.l.b16 %v63
    %v79 = vunpack.c.l.b16 %v64
    %v80 = vunpack.c.l.b16 %v65
    %v81 = vpack.c.b16 %v78, %v77
    %v82 = vpack.c.b16 %v80, %v79
    %vm85 = vcmask 261120
    %v87 = vsel %vm85, %v61, 0
    %89 = vmatprep.subr.bf16.mxu0 0
    %90 = vmatpush1.bf16.msra.mxu0 %v81
    %91 = vmatprep.subr.bf16.mxu0 0
    %92 = vmatpush1.bf16.msra.mxu0 %v82
    %93 = vmatprep.subr.bf16.mxu0 0
    %94 = vmatpush1.bf16.msra.mxu0 0
    %95 = vmatprep.subr.bf16.mxu0 0
    %96 = vmatpush1.bf16.msra.mxu0 0
    %97 = vmatprep.subr.bf16.mxu0 0
    %98 = vmatpush1.bf16.msra.mxu0 0
    %99 = vmatprep.subr.bf16.mxu0 0
    %100 = vmatpush1.bf16.msra.mxu0 0
    %101 = vmatprep.subr.bf16.mxu0 0
    %102 = vmatpush1.bf16.msra.mxu0 0
    %103 = vmatprep.subr.bf16.mxu0 0
    %104 = vmatpush1.bf16.msra.mxu0 0
    %105 = vmatprep.subr.bf16.mxu0 0
    %106 = vmatpush1.bf16.msra.mxu0 0
    %107 = vmatprep.subr.bf16.mxu0 0
    %108 = vmatpush1.bf16.msra.mxu0 0
    %109 = vmatprep.subr.bf16.mxu0 0
    %110 = vmatpush1.bf16.msra.mxu0 0
    %111 = vmatprep.subr.bf16.mxu0 0
    %112 = vmatpush1.bf16.msra.mxu0 0
    %113 = vmatprep.subr.bf16.mxu0 0
    %114 = vmatpush1.bf16.msra.mxu0 0
    %115 = vmatprep.subr.bf16.mxu0 0
    %116 = vmatpush1.bf16.msra.mxu0 0
    %117 = vmatprep.subr.bf16.mxu0 0
    %118 = vmatpush1.bf16.msra.mxu0 0
    %119 = vmatprep.subr.bf16.mxu0 0
    %120 = vmatpush1.bf16.msra.mxu0 0
    %121 = vmatprep.mubr.bf16.mxu0 0
    %122 = vmatmul.mubr.bf16.gmra.mrb[0].mxu0 %v87
    %v123 = vpop.f32.mrb[0].mxu0
    %v124 = vadd.f32 %v71, %v123
    %v125 = vpop.f32.mrb[0].mxu0
    %v126 = vpop.f32.mrb[0].mxu0
    %v127 = vpop.f32.mrb[0].mxu0
    %128 = vdwg.mxu0
    %v129 = vmax.f32 %v124, 0.0
    %v130 = vpack.c.bf16 %v129, %v129
    %v131 = vld [vmem:[#allocation7] sm:$0xf]
    %v132 = vld [vmem:[#allocation7 + $0x4] sm:$0xf]
    %v133 = vld [vmem:[#allocation7 + $0x8] sm:$0xf]
    %v134 = vld [vmem:[#allocation7 + $0xc] sm:$0xf]
    %v135 = vld [vmem:[#allocation7 + $0x10] sm:$0xf]
    %v136 = vld [vmem:[#allocation7 + $0x14] sm:$0xf]
    %v137 = vld [vmem:[#allocation7 + $0x18] sm:$0xf]
    %v138 = vld [vmem:[#allocation7 + $0x1c] sm:$0xf]
    %v139 = vld [vmem:[#allocation7 + $0x20] sm:$0xf]
    %v140 = vld [vmem:[#allocation7 + $0x24] sm:$0xf]
    %v141 = vld [vmem:[#allocation7 + $0x28] sm:$0xf]
    %v142 = vld [vmem:[#allocation7 + $0x2c] sm:$0xf]
    %v143 = vld [vmem:[#allocation7 + $0x30] sm:$0xf]
    %v144 = vld [vmem:[#allocation7 + $0x34] sm:$0xf]
    %v145 = vld [vmem:[#allocation7 + $0x38] sm:$0xf]
    %v146 = vld [vmem:[#allocation7 + $0x3c] sm:$0xf]
    %v147 = vld [vmem:[%s4] sm:$0x1]
    %v149 = vlaneseq
    %v150 = vshrl.u32 %v149, 7
    %v151 = vsub.s32 0, %v150
    %v152 = vrot.slane %v147, %v151
    %v170 = vunpack.c.l.b16 %v131
    %v171 = vunpack.c.l.b16 %v132
    %v172 = vunpack.c.l.b16 %v133
    %v173 = vunpack.c.l.b16 %v134
    %v174 = vunpack.c.l.b16 %v135
    %v175 = vunpack.c.l.b16 %v136
    %v176 = vunpack.c.l.b16 %v137
    %v177 = vunpack.c.l.b16 %v138
    %v178 = vunpack.c.l.b16 %v139
    %v179 = vunpack.c.l.b16 %v140
    %v180 = vunpack.c.l.b16 %v141
    %v181 = vunpack.c.l.b16 %v142
    %v182 = vunpack.c.l.b16 %v143
    %v183 = vunpack.c.l.b16 %v144
    %v184 = vunpack.c.l.b16 %v145
    %v185 = vunpack.c.l.b16 %v146
    %v186 = vpack.c.b16 %v171, %v170
    %v187 = vpack.c.b16 %v173, %v172
    %v188 = vpack.c.b16 %v175, %v174
    %v189 = vpack.c.b16 %v177, %v176
    %v190 = vpack.c.b16 %v179, %v178
    %v191 = vpack.c.b16 %v181, %v180
    %v192 = vpack.c.b16 %v183, %v182
    %v193 = vpack.c.b16 %v185, %v184
    %202 = vmatprep.subr.bf16.mxu0 0
    %203 = vmatpush1.bf16.msra.mxu0 %v186
    %204 = vmatprep.subr.bf16.mxu0 0
    %205 = vmatpush1.bf16.msra.mxu0 %v187
    %206 = vmatprep.subr.bf16.mxu0 0
    %207 = vmatpush1.bf16.msra.mxu0 %v188
    %208 = vmatprep.subr.bf16.mxu0 0
    %209 = vmatpush1.bf16.msra.mxu0 %v189
    %210 = vmatprep.subr.bf16.mxu0 0
    %211 = vmatpush1.bf16.msra.mxu0 %v190
    %212 = vmatprep.subr.bf16.mxu0 0
    %213 = vmatpush1.bf16.msra.mxu0 %v191
    %214 = vmatprep.subr.bf16.mxu0 0
    %215 = vmatpush1.bf16.msra.mxu0 %v192
    %216 = vmatprep.subr.bf16.mxu0 0
    %217 = vmatpush1.bf16.msra.mxu0 %v193
    %218 = vmatprep.subr.bf16.mxu0 0
    %219 = vmatpush1.bf16.msra.mxu0 0
    %220 = vmatprep.subr.bf16.mxu0 0
    %221 = vmatpush1.bf16.msra.mxu0 0
    %222 = vmatprep.subr.bf16.mxu0 0
    %223 = vmatpush1.bf16.msra.mxu0 0
    %224 = vmatprep.subr.bf16.mxu0 0
    %225 = vmatpush1.bf16.msra.mxu0 0
    %226 = vmatprep.subr.bf16.mxu0 0
    %227 = vmatpush1.bf16.msra.mxu0 0
    %228 = vmatprep.subr.bf16.mxu0 0
    %229 = vmatpush1.bf16.msra.mxu0 0
    %230 = vmatprep.subr.bf16.mxu0 0
    %231 = vmatpush1.bf16.msra.mxu0 0
    %232 = vmatprep.subr.bf16.mxu0 0
    %233 = vmatpush1.bf16.msra.mxu0 0
    %234 = vmatprep.mubr.bf16.mxu0 0
    %235 = vmatmul.mubr.bf16.gmra.mrb[0].mxu0 %v130
    %v236 = vpop.f32.mrb[0].mxu0
    %v237 = vadd.f32 %v152, %v236
    %v238 = vpop.f32.mrb[0].mxu0
    %v239 = vpop.f32.mrb[0].mxu0
    %v240 = vpop.f32.mrb[0].mxu0
    %241 = vdwg.mxu0
    %v242 = vmax.f32 %v237, 0.0
    %243 = vst [vmem:[#allocation8] sm:$0xff] %v242
    // Predicated region
    $region34: #{tpu_custom_call.1} parent=1 // pred_check
      _
    $region35: #{tpu_custom_call.1} parent=1 // pred_check_branch
      %245 = sbr.rel (0) target = $region37
    $region36: #{tpu_custom_call.1} parent=1 // pred_region
      %s247 = ssub.s32 128, 128
      %248 = vsyncadd [#allocation4], %s247
      %s250 = sshll.u32 [#allocation8], 4
      %s251 = int_to_ptr.vmem [resolvable:$true] %s250
      %253 = dma.vmem_to_hbm [thread:$0]  %s251, 128, %s5, [#allocation4]
    $region37: #{tpu_custom_call.1} parent=1 // pred_fallthru
      _
    // Predicated region
    $region38: #{tpu_custom_call.1} parent=1 // pred_check
      _
    $region39: #{tpu_custom_call.1} parent=1 // pred_check_branch
      %255 = sbr.rel (0) target = $region41
    $region40: #{tpu_custom_call.1} parent=1 // pred_region
      %256 = dma.done [#allocation4], 128
    $region41: #{tpu_custom_call.1} parent=1 // pred_fallthru
      _
    %257 = vsyncpa [#allocation3], 1
    %258 = vsyncpa [#allocation6], 1
    %259 = vsyncpa [#allocation4], 1

</llo_original>
